<compile_context>
chip_gen: v5e
topology: v5e:2x2
jax: 0.10.0
libtpu: 0.0.40
codegen_flags: <defaults>
</compile_context>

<pallas_src>
import functools

import jax
import jax.numpy as jnp
from jax.experimental import pallas as pl
from jax.experimental.pallas import tpu as pltpu


def _round_up(n, m):
    return ((n + m - 1) // m) * m


def qnetwork_kernel(x_ref, w_ref, b_ref, o_ref, *, obs_p, n_actions):
    """Fused 3-layer MLP on one batch tile.

    x_ref: (TB, obs_p)  f32 activations (un-padded feature lanes)
    w_ref: (3, P, P)    bf16 pre-transposed, zero-padded weights (in, out)
    b_ref: (3, P)       f32 zero-padded biases
    o_ref: (TB, n_actions) f32 Q-values
    """
    x = x_ref[...].astype(jnp.bfloat16)                     # (TB, obs_p)

    # fc1 + ReLU: only the first obs_p rows of the padded weight tile matter.
    h = jnp.dot(x, w_ref[0, :obs_p, :], preferred_element_type=jnp.float32)
    h = jnp.maximum(h + b_ref[0:1, :], 0.0)

    # fc2 + ReLU
    h = jnp.dot(h.astype(jnp.bfloat16), w_ref[1],
                preferred_element_type=jnp.float32)
    h = jnp.maximum(h + b_ref[1:2, :], 0.0)

    # fc3 (no activation); only the real n_actions lanes leave VMEM.
    out = jnp.dot(h.astype(jnp.bfloat16), w_ref[2],
                  preferred_element_type=jnp.float32) + b_ref[2:3, :]
    o_ref[...] = out[:, :n_actions].astype(o_ref.dtype)


def pack_params(params, obs_size, hidden_size, n_actions):
    """One-time packing: transpose each weight to (in, out), zero-pad to a
    uniform (P, P) tile, stack into one bf16 slab + one f32 bias slab.
    Zero padding keeps the forward pass exactly equal to the unpadded net."""
    P = _round_up(max(obs_size, hidden_size, n_actions), 128)
    # TODO(synk): for large hidden sizes, switch to per-layer slabs plus a
    # K-reduction grid axis instead of a uniform P x P pad (VMEM budget).

    def pad_t(w):  # torch (out, in) layout -> (P, P) transposed + zero-padded
        wt = w.T.astype(jnp.float32)
        return jnp.zeros((P, P), jnp.float32).at[: wt.shape[0], : wt.shape[1]].set(wt)

    def pad_b(b):
        b = b.reshape(-1).astype(jnp.float32)
        return jnp.zeros((P,), jnp.float32).at[: b.shape[0]].set(b)

    w_slab = jnp.stack(
        [pad_t(params["w1"]), pad_t(params["w2"]), pad_t(params["w3"])]
    ).astype(jnp.bfloat16)
    b_slab = jnp.stack([pad_b(params["b1"]), pad_b(params["b2"]), pad_b(params["b3"])])
    return w_slab, b_slab, P


def qnetwork_forward(x, w_slab, b_slab, n_actions, *, batch_tile=2048):
    """x: (B, obs_size). w_slab/b_slab from pack_params."""
    B, obs = x.shape
    P = w_slab.shape[-1]
    obs_p = _round_up(obs, 8)          # keep the fc1 weight slice sublane-aligned

    # Batch tile: multiple of 8 (8,128)-constraint), big enough to amortize the
    # per-grid-step overhead; split small batches into 2 balanced tiles so
    # v7x's two TensorCores both get work (no-op cost on single-TC v5e/v6e).
    TB = max(8, _round_up(min(batch_tile, B), 8))
    if B > 8 and B <= 2 * TB:
        TB = _round_up(pl.cdiv(B, 2), 8)
    B_pad = _round_up(B, TB)
    n_tiles = B_pad // TB

    x = x.astype(jnp.float32)          # mirrors x.float() in the PyTorch module
    if B_pad != B or obs_p != obs:
        x_in = jnp.zeros((B_pad, obs_p), jnp.float32).at[:B, :obs].set(x)
    else:
        x_in = x

    flops = 2 * B_pad * (obs_p * P + P * P + P * P)
    bytes_accessed = (x_in.size * 4 + w_slab.size * 2 + b_slab.size * 4
                      + B_pad * n_actions * 4)

    kernel = functools.partial(qnetwork_kernel, obs_p=obs_p, n_actions=n_actions)

    out = pl.pallas_call(
        kernel,
        out_shape=jax.ShapeDtypeStruct((B_pad, n_actions), jnp.float32),
        grid=(n_tiles,),
        in_specs=[
            pl.BlockSpec((TB, obs_p), lambda i: (i, 0)),       # batch tile of x
            pl.BlockSpec((3, P, P), lambda i: (0, 0, 0)),      # weights: VMEM-resident
            pl.BlockSpec((3, P), lambda i: (0, 0)),            # biases: VMEM-resident
        ],
        out_specs=pl.BlockSpec((TB, n_actions), lambda i: (i, 0)),
        compiler_params=pltpu.CompilerParams(
            dimension_semantics=("parallel",),                 # v7x: 2 TCs split batch
            vmem_limit_bytes=32 * 1024 * 1024),
        cost_estimate=pl.CostEstimate(
            flops=flops, transcendentals=0, bytes_accessed=bytes_accessed),
    )(x_in, w_slab, b_slab)

    return out if B_pad == B else out[:B]


def init_params(key, obs_size, hidden_size, n_actions):
    """Deterministic init mimicking nn.Linear (uniform +-1/sqrt(fan_in))."""
    def linear(k, out_f, in_f):
        kw, kb = jax.random.split(k)
        bound = 1.0 / jnp.sqrt(jnp.float32(in_f))
        w = jax.random.uniform(kw, (out_f, in_f), jnp.float32, -bound, bound)
        b = jax.random.uniform(kb, (1, out_f), jnp.float32, -bound, bound)
        return w, b

    k1, k2, k3 = jax.random.split(key, 3)
    w1, b1 = linear(k1, hidden_size, obs_size)
    w2, b2 = linear(k2, hidden_size, hidden_size)
    w3, b3 = linear(k3, n_actions, hidden_size)
    return {"w1": w1, "b1": b1, "w2": w2, "b2": b2, "w3": w3, "b3": b3}


def reference_forward_f32(x, params):
    h1 = jnp.maximum(x @ params["w1"].T + params["b1"], 0.0)
    h2 = jnp.maximum(h1 @ params["w2"].T + params["b2"], 0.0)
    return h2 @ params["w3"].T + params["b3"]


def reference_forward_bf16(x, params):
    """Mirrors the kernel's mixed precision: bf16 operands, f32 accumulation."""
    def lin(a, w, b):
        y = jax.lax.dot_general(
            a.astype(jnp.bfloat16), w.astype(jnp.bfloat16),
            dimension_numbers=(((1,), (1,)), ((), ())),
            preferred_element_type=jnp.float32)
        return y + b
    h1 = jnp.maximum(lin(x, params["w1"], params["b1"]), 0.0)
    h2 = jnp.maximum(lin(h1, params["w2"], params["b2"]), 0.0)
    return lin(h2, params["w3"], params["b3"])


if __name__ == "__main__":
    obs_size, hidden_size, n_actions = 16, 32, 4
    batch = 8

    key = jax.random.PRNGKey(0)
    kx, kp = jax.random.split(key)
    x = jax.random.normal(kx, (batch, obs_size), jnp.float32)
    params = init_params(kp, obs_size, hidden_size, n_actions)

    w_slab, b_slab, _ = pack_params(params, obs_size, hidden_size, n_actions)
    out = qnetwork_forward(x, w_slab, b_slab, n_actions)
    out = jax.block_until_ready(out)

    assert out.shape == (batch, n_actions)
    ref_bf16 = reference_forward_bf16(x, params)
    ref_f32 = reference_forward_f32(x, params)
    assert jnp.allclose(out, ref_bf16, atol=2e-3, rtol=2e-3), "mismatch vs bf16 ref"
    assert jnp.allclose(out, ref_f32, atol=5e-2, rtol=5e-2), "mismatch vs f32 ref"

    print("KERNEL_OK")
</pallas_src>

<mosaic_0001>
module attributes {stable_mosaic.version = 11 : i64} {
  func.func @qnetwork_kernel(%arg0: i32, %arg1: memref<8x16xf32, #tpu.memory_space<vmem>>, %arg2: memref<3x128x128xbf16, #tpu.memory_space<vmem>>, %arg3: memref<3x128xf32, #tpu.memory_space<vmem>>, %arg4: memref<8x4xf32, #tpu.memory_space<vmem>>) attributes {dimension_semantics = [#tpu.dimension_semantics<parallel>], iteration_bounds = array<i64: 1>, scalar_prefetch = 0 : i64, scratch_operands = 0 : i64, tpu.core_type = #tpu.core_type<tc>, window_params = [{transform_indices = @transform_0, window_bounds = array<i64: 8, 16>}, {pipeline_mode = #tpu.pipeline_mode<synchronous>, transform_indices = @transform_1, window_bounds = array<i64: 3, 128, 128>}, {pipeline_mode = #tpu.pipeline_mode<synchronous>, transform_indices = @transform_2, window_bounds = array<i64: 3, 128>}, {transform_indices = @transform_3, window_bounds = array<i64: 8, 4>}]} {
    %c0 = arith.constant 0 : index
    %c0_0 = arith.constant 0 : index
    %0 = vector.load %arg1[%c0, %c0_0] : memref<8x16xf32, #tpu.memory_space<vmem>>, vector<8x16xf32>
    %1 = arith.truncf %0 : vector<8x16xf32> to vector<8x16xbf16>
    %c0_1 = arith.constant 0 : index
    %c0_2 = arith.constant 0 : index
    %c0_3 = arith.constant 0 : index
    %2 = vector.load %arg2[%c0_1, %c0_2, %c0_3] : memref<3x128x128xbf16, #tpu.memory_space<vmem>>, vector<1x16x128xbf16>
    %3 = vector.shape_cast %2 : vector<1x16x128xbf16> to vector<16x128xbf16>
    %cst = arith.constant dense<0.000000e+00> : vector<8x128xf32>
    %4 = tpu.matmul %1, %3, %cst {dimension_numbers = #tpu.dot_dimension_numbers<[1], [0], [0], [1], [0, 0, 1, 1], [], []>} : vector<8x16xbf16>, vector<16x128xbf16>, vector<8x128xf32> -> vector<8x128xf32>
    %c0_4 = arith.constant 0 : index
    %c0_5 = arith.constant 0 : index
    %5 = vector.load %arg3[%c0_4, %c0_5] : memref<3x128xf32, #tpu.memory_space<vmem>>, vector<1x128xf32>
    %6 = vector.broadcast %5 : vector<1x128xf32> to vector<8x128xf32>
    %7 = arith.addf %4, %6 : vector<8x128xf32>
    %cst_6 = arith.constant 0.000000e+00 : f32
    %8 = vector.broadcast %cst_6 : f32 to vector<8x128xf32>
    %9 = arith.maximumf %7, %8 : vector<8x128xf32>
    %10 = arith.truncf %9 : vector<8x128xf32> to vector<8x128xbf16>
    %c1 = arith.constant 1 : index
    %c0_7 = arith.constant 0 : index
    %c0_8 = arith.constant 0 : index
    %11 = vector.load %arg2[%c1, %c0_7, %c0_8] : memref<3x128x128xbf16, #tpu.memory_space<vmem>>, vector<1x128x128xbf16>
    %12 = vector.shape_cast %11 : vector<1x128x128xbf16> to vector<128x128xbf16>
    %cst_9 = arith.constant dense<0.000000e+00> : vector<8x128xf32>
    %13 = tpu.matmul %10, %12, %cst_9 {dimension_numbers = #tpu.dot_dimension_numbers<[1], [0], [0], [1], [0, 0, 1, 1], [], []>} : vector<8x128xbf16>, vector<128x128xbf16>, vector<8x128xf32> -> vector<8x128xf32>
    %c1_10 = arith.constant 1 : index
    %c0_11 = arith.constant 0 : index
    %14 = vector.load %arg3[%c1_10, %c0_11] : memref<3x128xf32, #tpu.memory_space<vmem>>, vector<1x128xf32>
    %15 = vector.broadcast %14 : vector<1x128xf32> to vector<8x128xf32>
    %16 = arith.addf %13, %15 : vector<8x128xf32>
    %cst_12 = arith.constant 0.000000e+00 : f32
    %17 = vector.broadcast %cst_12 : f32 to vector<8x128xf32>
    %18 = arith.maximumf %16, %17 : vector<8x128xf32>
    %19 = arith.truncf %18 : vector<8x128xf32> to vector<8x128xbf16>
    %c2 = arith.constant 2 : index
    %c0_13 = arith.constant 0 : index
    %c0_14 = arith.constant 0 : index
    %20 = vector.load %arg2[%c2, %c0_13, %c0_14] : memref<3x128x128xbf16, #tpu.memory_space<vmem>>, vector<1x128x128xbf16>
    %21 = vector.shape_cast %20 : vector<1x128x128xbf16> to vector<128x128xbf16>
    %cst_15 = arith.constant dense<0.000000e+00> : vector<8x128xf32>
    %22 = tpu.matmul %19, %21, %cst_15 {dimension_numbers = #tpu.dot_dimension_numbers<[1], [0], [0], [1], [0, 0, 1, 1], [], []>} : vector<8x128xbf16>, vector<128x128xbf16>, vector<8x128xf32> -> vector<8x128xf32>
    %c2_16 = arith.constant 2 : index
    %c0_17 = arith.constant 0 : index
    %23 = vector.load %arg3[%c2_16, %c0_17] : memref<3x128xf32, #tpu.memory_space<vmem>>, vector<1x128xf32>
    %24 = vector.broadcast %23 : vector<1x128xf32> to vector<8x128xf32>
    %25 = arith.addf %22, %24 : vector<8x128xf32>
    %26 = vector.extract_strided_slice %25 {offsets = [0, 0], sizes = [8, 4], strides = [1, 1]} : vector<8x128xf32> to vector<8x4xf32>
    %c0_18 = arith.constant 0 : index
    %c0_19 = arith.constant 0 : index
    %27 = vector.load %arg4[%c0_18, %c0_19] : memref<8x4xf32, #tpu.memory_space<vmem>>, vector<8x4xf32>
    tpu.vector_store %arg4[%c0_18, %c0_19], %26 {strides = array<i32>} : memref<8x4xf32, #tpu.memory_space<vmem>>, vector<8x4xf32>,
    return
  }
  func.func @transform_0(%arg0: i32) -> (i32, i32) {
    %c0_i32 = arith.constant 0 : i32
    %c0_i32_0 = arith.constant 0 : i32
    return %arg0, %c0_i32 : i32, i32
  }
  func.func @transform_1(%arg0: i32) -> (i32, i32, i32) {
    %c0_i32 = arith.constant 0 : i32
    %c0_i32_0 = arith.constant 0 : i32
    %c0_i32_1 = arith.constant 0 : i32
    %c0_i32_2 = arith.constant 0 : i32
    return %c0_i32, %c0_i32_0, %c0_i32_1 : i32, i32, i32
  }
  func.func @transform_2(%arg0: i32) -> (i32, i32) {
    %c0_i32 = arith.constant 0 : i32
    %c0_i32_0 = arith.constant 0 : i32
    %c0_i32_1 = arith.constant 0 : i32
    return %c0_i32, %c0_i32_0 : i32, i32
  }
  func.func @transform_3(%arg0: i32) -> (i32, i32) {
    %c0_i32 = arith.constant 0 : i32
    %c0_i32_0 = arith.constant 0 : i32
    return %arg0, %c0_i32 : i32, i32
  }
}

</mosaic_0001>

<llo_original>
// kernel: tpu_custom_call.1
$region0: #{tpu_custom_call.1}
  #allocation0 [shape = 'u32[]', space=smem, size = 0x4, offset = 0x4, fixed_abs, tag = 'smem constant byte address 0x4 - core index']
  #allocation1 [shape = 'u32[72,128]{1,0:T(1,128)}', space=vmem, size = 0x9000, scoped, tag = 'internal scratch']
  %s0 = inlined_call_operand.hbm [shape: f32[8,16], index: 0, kind: input, shape index: {}]
  %s1 = inlined_call_operand.hbm [shape: bf16[3,128,128], index: 1, kind: input, shape index: {}]
  %s2 = inlined_call_operand.hbm [shape: f32[3,128], index: 2, kind: input, shape index: {}]
  %s3 = inlined_call_operand.vmem [shape: f32[8,4], index: 3, kind: output, shape index: {}]
  %s4 = sld [smem:[#allocation0]]
  $region34: #{tpu_custom_call.1} parent=0
    _
  %s6 = ssub.s32 1, %s4
  %s7 = scalar_select 0, %s6, %s4
  $region1: #{tpu_custom_call.1} parent=0
    #allocation2 [shape = 'u8[4096]{0}', space=vmem, size = 0x1000, scoped, tag = 'input window, operand 0, single buffered']
    #allocation3 [shape = 's32[1]{0}', space=sflag, size = 0x4, scoped, tag = 'scoped memory for tpu_custom_call.1']
    #allocation4 [shape = 'u8[98304]{0}', space=vmem, size = 0x18000, scoped, tag = 'input window, operand 1, single buffered']
    #allocation5 [shape = 's32[1]{0}', space=sflag, size = 0x4, scoped, tag = 'scoped memory for tpu_custom_call.1']
    #allocation6 [shape = 'u8[2048]{0}', space=vmem, size = 0x800, scoped, tag = 'input window, operand 2, single buffered']
    %8 = vsyncpa [#allocation3], 0
    %9 = vsyncpa [#allocation5], 0
    // Predicated region
    $region2: #{tpu_custom_call.1} parent=1 // pred_check
      _
    $region3: #{tpu_custom_call.1} parent=1 // pred_check_branch
      %11 = sbr.rel (0) target = $region5
    $region4: #{tpu_custom_call.1} parent=1 // pred_region
      %13 = vsyncadd [#allocation3], 0
      %s15 = sshll.u32 %s0, 4
      %s16 = int_to_ptr.hbm [resolvable:$true] %s15
      %s17 = sshll.u32 [#allocation2], 4
      %s18 = int_to_ptr.vmem [resolvable:$true] %s17
      %20 = dma.hbm_to_vmem [thread:$0]  %s16, 128, %s18, [#allocation3]
    $region5: #{tpu_custom_call.1} parent=1 // pred_fallthru
      _
    // Predicated region
    $region6: #{tpu_custom_call.1} parent=1 // pred_check
      _
    $region7: #{tpu_custom_call.1} parent=1 // pred_check_branch
      %22 = sbr.rel (0) target = $region9
    $region8: #{tpu_custom_call.1} parent=1 // pred_region
      %24 = vsyncadd [#allocation5], 0
      %s25 = sshll.u32 %s1, 4
      %s26 = int_to_ptr.hbm [resolvable:$true] %s25
      %s27 = sshll.u32 [#allocation4], 4
      %s28 = int_to_ptr.vmem [resolvable:$true] %s27
      %33 = dma.hbm_to_vmem [thread:$0]  %s26, 3072, %s28, [#allocation5], 64, 64, 4
    $region9: #{tpu_custom_call.1} parent=1 // pred_fallthru
      _
    // Predicated region
    $region10: #{tpu_custom_call.1} parent=1 // pred_check
      _
    $region11: #{tpu_custom_call.1} parent=1 // pred_check_branch
      %35 = sbr.rel (0) target = $region13
    $region12: #{tpu_custom_call.1} parent=1 // pred_region
      %37 = vsyncadd [#allocation5], 0
      %s39 = sshll.u32 %s2, 4
      %s40 = int_to_ptr.hbm [resolvable:$true] %s39
      %s41 = sshll.u32 [#allocation6], 4
      %s42 = int_to_ptr.vmem [resolvable:$true] %s41
      %44 = dma.hbm_to_vmem [thread:$0]  %s40, 64, %s42, [#allocation5]
    $region13: #{tpu_custom_call.1} parent=1 // pred_fallthru
      _
    // Predicated region
    $region14: #{tpu_custom_call.1} parent=1 // pred_check
      _
    $region15: #{tpu_custom_call.1} parent=1 // pred_check_branch
      %46 = sbr.rel (0) target = $region17
    $region16: #{tpu_custom_call.1} parent=1 // pred_region
      %48 = dma.done [#allocation3], 128
    $region17: #{tpu_custom_call.1} parent=1 // pred_fallthru
      _
    // Predicated region
    $region18: #{tpu_custom_call.1} parent=1 // pred_check
      _
    $region19: #{tpu_custom_call.1} parent=1 // pred_check_branch
      %50 = sbr.rel (0) target = $region21
    $region20: #{tpu_custom_call.1} parent=1 // pred_region
      %52 = dma.done [#allocation5], 3072
    $region21: #{tpu_custom_call.1} parent=1 // pred_fallthru
      _
    // Predicated region
    $region22: #{tpu_custom_call.1} parent=1 // pred_check
      _
    $region23: #{tpu_custom_call.1} parent=1 // pred_check_branch
      %54 = sbr.rel (0) target = $region25
    $region24: #{tpu_custom_call.1} parent=1 // pred_region
      %56 = dma.done [#allocation5], 64
    $region25: #{tpu_custom_call.1} parent=1 // pred_fallthru
      _
    %v58 = vld [vmem:[#allocation2] sm:$0xff]
    %v59 = vpack.c.bf16 %v58, %v58
    %v60 = vld [vmem:[#allocation4] sm:$0xf]
    %v61 = vld [vmem:[#allocation4 + $0x4] sm:$0xf]
    %v62 = vld [vmem:[#allocation6] sm:$0x1]
    %v63 = vperm.slane %v62, 0
    %v66 = vunpack.c.l.b16 %v60
    %v67 = vunpack.c.l.b16 %v61
    %v68 = vpack.c.b16 %v67, %v66
    %vm70 = vcmask 130048
    %v72 = vsel %vm70, %v59, 0
    %74 = vmatpush.bf16.msra.mxu0 0
    %75 = vmatpush.bf16.msra.mxu0 0
    %76 = vmatpush.bf16.msra.mxu0 0
    %77 = vmatpush.bf16.msra.mxu0 0
    %78 = vmatpush.bf16.msra.mxu0 0
    %79 = vmatpush.bf16.msra.mxu0 0
    %80 = vmatpush.bf16.msra.mxu0 0
    %81 = vmatpush.bf16.msra.mxu0 %v68
    %82 = vmatmul.bf16.gmra.mxu0 %v72
    %v83 = vpop.f32.mrf.mxu0
    %v84 = vadd.f32 %v63, %v83
    %v85 = vpop.f32.mrf.mxu0
    %86 = vdwg.mxu0
    %v87 = vmax.f32 %v84, 0.0
    %v88 = vpack.c.bf16 %v87, %v87
    %s89 = scalar_lea.vmem [#allocation4], 64
    %v90 = vld [vmem:[%s89] sm:$0xf]
    %v91 = vld [vmem:[%s89 + $0x4] sm:$0xf]
    %v92 = vld [vmem:[%s89 + $0x8] sm:$0xf]
    %v93 = vld [vmem:[%s89 + $0xc] sm:$0xf]
    %v94 = vld [vmem:[%s89 + $0x10] sm:$0xf]
    %v95 = vld [vmem:[%s89 + $0x14] sm:$0xf]
    %v96 = vld [vmem:[%s89 + $0x18] sm:$0xf]
    %v97 = vld [vmem:[%s89 + $0x1c] sm:$0xf]
    %v98 = vld [vmem:[%s89 + $0x20] sm:$0xf]
    %v99 = vld [vmem:[%s89 + $0x24] sm:$0xf]
    %v100 = vld [vmem:[%s89 + $0x28] sm:$0xf]
    %v101 = vld [vmem:[%s89 + $0x2c] sm:$0xf]
    %v102 = vld [vmem:[%s89 + $0x30] sm:$0xf]
    %v103 = vld [vmem:[%s89 + $0x34] sm:$0xf]
    %v104 = vld [vmem:[%s89 + $0x38] sm:$0xf]
    %v105 = vld [vmem:[%s89 + $0x3c] sm:$0xf]
    %v106 = vld [vmem:[#allocation6 + $0x1] sm:$0x1]
    %v107 = vperm.slane %v106, 0
    %v124 = vunpack.c.l.b16 %v90
    %v125 = vunpack.c.l.b16 %v91
    %v126 = vunpack.c.l.b16 %v92
    %v127 = vunpack.c.l.b16 %v93
    %v128 = vunpack.c.l.b16 %v94
    %v129 = vunpack.c.l.b16 %v95
    %v130 = vunpack.c.l.b16 %v96
    %v131 = vunpack.c.l.b16 %v97
    %v132 = vunpack.c.l.b16 %v98
    %v133 = vunpack.c.l.b16 %v99
    %v134 = vunpack.c.l.b16 %v100
    %v135 = vunpack.c.l.b16 %v101
    %v136 = vunpack.c.l.b16 %v102
    %v137 = vunpack.c.l.b16 %v103
    %v138 = vunpack.c.l.b16 %v104
    %v139 = vunpack.c.l.b16 %v105
    %v140 = vpack.c.b16 %v125, %v124
    %v141 = vpack.c.b16 %v127, %v126
    %v142 = vpack.c.b16 %v129, %v128
    %v143 = vpack.c.b16 %v131, %v130
    %v144 = vpack.c.b16 %v133, %v132
    %v145 = vpack.c.b16 %v135, %v134
    %v146 = vpack.c.b16 %v137, %v136
    %v147 = vpack.c.b16 %v139, %v138
    %156 = vmatpush.bf16.msra.mxu0 %v147
    %157 = vmatpush.bf16.msra.mxu0 %v146
    %158 = vmatpush.bf16.msra.mxu0 %v145
    %159 = vmatpush.bf16.msra.mxu0 %v144
    %160 = vmatpush.bf16.msra.mxu0 %v143
    %161 = vmatpush.bf16.msra.mxu0 %v142
    %162 = vmatpush.bf16.msra.mxu0 %v141
    %163 = vmatpush.bf16.msra.mxu0 %v140
    %164 = vmatmul.bf16.gmra.mxu0 %v88
    %v165 = vpop.f32.mrf.mxu0
    %v166 = vadd.f32 %v107, %v165
    %v167 = vpop.f32.mrf.mxu0
    %168 = vdwg.mxu0
    %v169 = vmax.f32 %v166, 0.0
    %v170 = vpack.c.bf16 %v169, %v169
    %s171 = scalar_lea.vmem [#allocation4], 128
    %v172 = vld [vmem:[%s171] sm:$0xf]
    %v173 = vld [vmem:[%s171 + $0x4] sm:$0xf]
    %v174 = vld [vmem:[%s171 + $0x8] sm:$0xf]
    %v175 = vld [vmem:[%s171 + $0xc] sm:$0xf]
    %v176 = vld [vmem:[%s171 + $0x10] sm:$0xf]
    %v177 = vld [vmem:[%s171 + $0x14] sm:$0xf]
    %v178 = vld [vmem:[%s171 + $0x18] sm:$0xf]
    %v179 = vld [vmem:[%s171 + $0x1c] sm:$0xf]
    %v180 = vld [vmem:[%s171 + $0x20] sm:$0xf]
    %v181 = vld [vmem:[%s171 + $0x24] sm:$0xf]
    %v182 = vld [vmem:[%s171 + $0x28] sm:$0xf]
    %v183 = vld [vmem:[%s171 + $0x2c] sm:$0xf]
    %v184 = vld [vmem:[%s171 + $0x30] sm:$0xf]
    %v185 = vld [vmem:[%s171 + $0x34] sm:$0xf]
    %v186 = vld [vmem:[%s171 + $0x38] sm:$0xf]
    %v187 = vld [vmem:[%s171 + $0x3c] sm:$0xf]
    %v188 = vld [vmem:[#allocation6 + $0x2] sm:$0x1]
    %v189 = vperm.slane %v188, 0
    %v206 = vunpack.c.l.b16 %v172
    %v207 = vunpack.c.l.b16 %v173
    %v208 = vunpack.c.l.b16 %v174
    %v209 = vunpack.c.l.b16 %v175
    %v210 = vunpack.c.l.b16 %v176
    %v211 = vunpack.c.l.b16 %v177
    %v212 = vunpack.c.l.b16 %v178
    %v213 = vunpack.c.l.b16 %v179
    %v214 = vunpack.c.l.b16 %v180
    %v215 = vunpack.c.l.b16 %v181
    %v216 = vunpack.c.l.b16 %v182
    %v217 = vunpack.c.l.b16 %v183
    %v218 = vunpack.c.l.b16 %v184
    %v219 = vunpack.c.l.b16 %v185
    %v220 = vunpack.c.l.b16 %v186
    %v221 = vunpack.c.l.b16 %v187
    %v222 = vpack.c.b16 %v207, %v206
    %v223 = vpack.c.b16 %v209, %v208
    %v224 = vpack.c.b16 %v211, %v210
    %v225 = vpack.c.b16 %v213, %v212
    %v226 = vpack.c.b16 %v215, %v214
    %v227 = vpack.c.b16 %v217, %v216
    %v228 = vpack.c.b16 %v219, %v218
    %v229 = vpack.c.b16 %v221, %v220
    %238 = vmatpush.bf16.msra.mxu0 %v229
    %239 = vmatpush.bf16.msra.mxu0 %v228
    %240 = vmatpush.bf16.msra.mxu0 %v227
    %241 = vmatpush.bf16.msra.mxu0 %v226
    %242 = vmatpush.bf16.msra.mxu0 %v225
    %243 = vmatpush.bf16.msra.mxu0 %v224
    %244 = vmatpush.bf16.msra.mxu0 %v223
    %245 = vmatpush.bf16.msra.mxu0 %v222
    %246 = vmatmul.bf16.gmra.mxu0 %v170
    %v247 = vpop.f32.mrf.mxu0
    %v248 = vadd.f32 %v189, %v247
    %v249 = vpop.f32.mrf.mxu0
    %250 = vdwg.mxu0
    %vm251 = vcmask 31744
    %252 = vst.msk [vmem:[%s3] sm:$0xff] %vm251, %v248
    // Predicated region
    $region26: #{tpu_custom_call.1} parent=1 // pred_check
      _
    $region27: #{tpu_custom_call.1} parent=1 // pred_check_branch
      %254 = sbr.rel (0) target = $region29
    $region28: #{tpu_custom_call.1} parent=1 // pred_region
      _
    $region29: #{tpu_custom_call.1} parent=1 // pred_fallthru
      _
    // Predicated region
    $region30: #{tpu_custom_call.1} parent=1 // pred_check
      _
    $region31: #{tpu_custom_call.1} parent=1 // pred_check_branch
      %256 = sbr.rel (0) target = $region33
    $region32: #{tpu_custom_call.1} parent=1 // pred_region
      _
    $region33: #{tpu_custom_call.1} parent=1 // pred_fallthru
      _
    %257 = vsyncpa [#allocation3], 1
    %258 = vsyncpa [#allocation5], 1

</llo_original>
